<compile_context>
chip_gen: v5e
topology: v5e:2x2
jax: 0.10.0
libtpu: 0.0.40
codegen_flags: <defaults>
</compile_context>

<pallas_src>
import functools
import math

import jax
import jax.numpy as jnp
from jax.experimental import pallas as pl
from jax.experimental.pallas import tpu as pltpu

XI = 1e-6          # VAT.XI
EPSILON = 5.0      # VAT.epsilon
NORM_EPS = 1e-12   # F.normalize default eps

_VMEM_STREAM_BUDGET = 12 * 1024 * 1024   # fits default scoped VMEM on v5e/v6e/v7x


# ---------------------------------------------------------------------------
# small helpers (operate on tiny (B, K) tiles inside the epilogues)
# ---------------------------------------------------------------------------

def _softmax(z):
    zmax = jnp.max(z, axis=1, keepdims=True)
    e = jnp.exp(z - zmax)
    return e / jnp.sum(e, axis=1, keepdims=True)


def _log_softmax(z):
    zmax = jnp.max(z, axis=1, keepdims=True)
    zs = z - zmax
    return zs - jnp.log(jnp.sum(jnp.exp(zs), axis=1, keepdims=True))


# ---------------------------------------------------------------------------
# Pass A (fused): accumulate over D tiles
#     ssq  += ||d_tile||^2          (per row)
#     s    += d_tile @ W_tile        (B, K)
#     WtW  += W_tile^T @ W_tile      (K, K)
# epilogue: g = d(meanKL)/d(logit_m), scale = eps/||g W^T||,
#           logit_m2 = logit + scale * g WtW, per-row KL loss,
#           g_scaled = scale * g  (consumed by the r_vadv pass).
# ---------------------------------------------------------------------------

def _vat_main_kernel(d_ref, logit_ref, wt_ref,
                     g_ref, loss_ref, logitm_ref,
                     s_acc, ssq_acc, wtw_acc, *, batch):
    k = pl.program_id(0)
    nk = pl.num_programs(0)

    @pl.when(k == 0)
    def _():
        s_acc[...] = jnp.zeros_like(s_acc)
        ssq_acc[...] = jnp.zeros_like(ssq_acc)
        wtw_acc[...] = jnp.zeros_like(wtw_acc)

    d = d_ref[...]                                   # (B, td) f32
    wt = wt_ref[...]                                 # (K, td) bf16  (W^T tile)

    ssq_acc[...] += jnp.sum(d * d, axis=1, keepdims=True)
    # s += d @ W  (contract the D tile).  bf16 operands on the MXU, f32 accum.
    # (d is cast to bf16 only for this product; it perturbs the direction of a
    #  1e-6-scaled vector -> negligible, documented per review.)
    s_acc[...] += jax.lax.dot_general(
        d.astype(jnp.bfloat16), wt, (((1,), (1,)), ((), ())),
        preferred_element_type=jnp.float32)          # (B, K)
    # WtW += W_tile^T @ W_tile  (rides the otherwise idle MXU, hidden under DMA)
    wtw_acc[...] += jax.lax.dot_general(
        wt, wt, (((1,), (1,)), ((), ())),
        preferred_element_type=jnp.float32)          # (K, K)

    @pl.when(k == nk - 1)
    def _():
        logit = logit_ref[...]                       # (B, K)
        inv_norm_d = 1.0 / jnp.maximum(jnp.sqrt(ssq_acc[...]), NORM_EPS)
        delta = (XI * inv_norm_d) * s_acc[...]       # logit perturbation, ~1e-8

        q = _softmax(logit)
        # Cancellation-free softmax difference:
        #   softmax(logit+delta)_j - q_j = q_j * (expm1(delta_j) - S) / (1 + S),
        #   S = sum_k q_k expm1(delta_k).  expm1 via 2nd-order series (|delta|
        #   <= ~1e-5 always, truncation error O(delta^3) -> negligible).
        em1 = delta * (1.0 + 0.5 * delta)
        S = jnp.sum(q * em1, axis=1, keepdims=True)
        g = q * (em1 - S) / ((1.0 + S) * batch)      # d(mean KL)/d(logit_m)

        # grad wrt the input is g @ W^T (never materialized):
        #   ||grad||^2 = g WtW g^T ;  grad @ W = g @ WtW
        gw = jnp.dot(g, wtw_acc[...], preferred_element_type=jnp.float32)
        grad_sq = jnp.sum(gw * g, axis=1, keepdims=True)
        scale = EPSILON / jnp.maximum(jnp.sqrt(grad_sq), NORM_EPS)   # (B, 1)

        logit_m2 = logit + scale * gw                # model(x + r_vadv)
        logq = _log_softmax(logit)
        logp2 = _log_softmax(logit_m2)
        kl = jnp.sum(q * (logq - logp2), axis=1, keepdims=True)      # (B, 1)

        loss_ref[...] = kl
        logitm_ref[...] = logit_m2
        g_ref[...] = scale * g                       # scale folded in for Pass C


# ---------------------------------------------------------------------------
# Pass C: r_vadv tile = g_scaled @ W_tile^T   ("parallel" over D)
# This is the only (B, D)-sized HBM write of the whole op.
# ---------------------------------------------------------------------------

def _vat_rvadv_kernel(g_ref, wt_ref, r_ref):
    r_ref[...] = jnp.dot(g_ref[...], wt_ref[...].astype(jnp.float32),
                         preferred_element_type=jnp.float32)


# ---------------------------------------------------------------------------
# wrapper
# ---------------------------------------------------------------------------

def prepare_model_weights(w):
    """Hoisted out of the per-step forward (W is a model parameter): cast to
    bf16 once and store W^T as (K, D) so the big D axis sits on lanes."""
    return jnp.asarray(w, jnp.float32).T.astype(jnp.bfloat16)


def _pick_d_tile(d_total, batch, n_cls):
    """Largest legal D tile within the VMEM stream budget (full D if it fits)."""
    # Per D-column bytes live per grid step (double-buffered):
    #   pass A: d block 4*B + W^T block 2*K ; pass C: W^T 2*K + r out 4*B.
    per_col = 2 * (4 * batch + 2 * n_cls + 4 * batch)
    max_td = max(128, _VMEM_STREAM_BUDGET // per_col)
    if d_total <= max_td:
        return d_total                       # single tile covering all of D
    best = None
    t = 128                                  # lane-dim blocks must be k*128
    while t <= max_td:
        if d_total % t == 0:
            best = t
        t += 128
    return best if best is not None else d_total   # fallback: one full-D tile


def vat_forward(x, logit, w_t, key, *, domain=None, lamda=None):
    """Returns (loss, (r_vadv, logit_m)) exactly like the PyTorch module.

    `w_t` is the hoisted bf16 (K, D) transpose from prepare_model_weights().
    """
    # TODO(synk): the identity model(x+d) = logit + d@W (which lets x and the
    # bias be dropped from the kernels) is exact only for the synthetic linear
    # model; restore an explicit model forward for a nonlinear model.
    # TODO(synk): `domain`/`lamda` feed the injected model in the reference
    # (e.g. gradient reversal); the linear stand-in ignores them.
    del domain, lamda

    B = x.shape[0]
    D = math.prod(x.shape[1:])
    K = logit.shape[1]
    assert w_t.shape == (K, D), (w_t.shape, (K, D))

    td = _pick_d_tile(D, B, K)
    nk = D // td if D % td == 0 else 1

    # torch.randn_like(x), flattened.  (In-kernel pltpu RNG would avoid this
    # (B, D) stream but has no interpret-mode lowering.)
    d = jax.random.normal(key, (B, D), dtype=jnp.float32)
    logit32 = jnp.asarray(logit, jnp.float32)

    cparams_red = pltpu.CompilerParams(dimension_semantics=("arbitrary",),
                                       vmem_limit_bytes=32 * 1024 * 1024)
    cparams_par = pltpu.CompilerParams(dimension_semantics=("parallel",),
                                       vmem_limit_bytes=32 * 1024 * 1024)

    # ---- Pass A (reduction over D; tiny lane-resident outputs) -------------
    g_scaled, loss_col, logit_m = pl.pallas_call(
        functools.partial(_vat_main_kernel, batch=B),
        out_shape=(jax.ShapeDtypeStruct((B, K), jnp.float32),   # scale * g
                   jax.ShapeDtypeStruct((B, 1), jnp.float32),   # per-row KL
                   jax.ShapeDtypeStruct((B, K), jnp.float32)),  # logit_m
        grid=(nk,),
        in_specs=[pl.BlockSpec((B, td), lambda k: (0, k)),      # d tile
                  pl.BlockSpec((B, K), lambda k: (0, 0)),       # logit (resident)
                  pl.BlockSpec((K, td), lambda k: (0, k))],     # W^T tile (bf16)
        out_specs=(pl.BlockSpec((B, K), lambda k: (0, 0)),
                   pl.BlockSpec((B, 1), lambda k: (0, 0)),
                   pl.BlockSpec((B, K), lambda k: (0, 0))),
        scratch_shapes=[pltpu.VMEM((B, K), jnp.float32),        # s accumulator
                        pltpu.VMEM((B, 1), jnp.float32),        # ||d||^2
                        pltpu.VMEM((K, K), jnp.float32)],       # W^T W Gram
        compiler_params=cparams_red,
    )(d, logit32, w_t)

    # ---- Pass C (parallel over D; only big HBM write) -----------------------
    r_flat = pl.pallas_call(
        _vat_rvadv_kernel,
        out_shape=jax.ShapeDtypeStruct((B, D), jnp.float32),
        grid=(nk,),
        in_specs=[pl.BlockSpec((B, K), lambda k: (0, 0)),
                  pl.BlockSpec((K, td), lambda k: (0, k))],
        out_specs=pl.BlockSpec((B, td), lambda k: (0, k)),
        compiler_params=cparams_par,
    )(g_scaled, w_t)

    loss = loss_col[:, 0]                   # reduction='none' -> shape (B,)
    r_vadv = r_flat.reshape(x.shape)
    return loss, (r_vadv, logit_m)


if __name__ == "__main__":
    B, C, H, W_img = 2, 4, 16, 16
    K = 8
    D = C * H * W_img

    root = jax.random.PRNGKey(0)
    kx, kw, kb, kd = jax.random.split(root, 4)

    x = jax.random.normal(kx, (B, C, H, W_img), dtype=jnp.float32)
    # Deterministic synthetic linear-model parameters.
    w = jax.random.normal(kw, (D, K), dtype=jnp.float32) * 0.02
    b = jax.random.normal(kb, (K,), dtype=jnp.float32) * 0.02

    # Clean model prediction the caller would pass in: logit = model(x).
    logit = x.reshape(B, D) @ w + b

    # Hoisted once per training run (not per forward call).
    w_t = prepare_model_weights(w)

    loss, (r_vadv, logit_m) = vat_forward(x, logit, w_t, kd)
    jax.block_until_ready((loss, r_vadv, logit_m))

    assert loss.shape == (B,)
    assert r_vadv.shape == (B, C, H, W_img)
    assert logit_m.shape == (B, K)
    assert bool(jnp.all(jnp.isfinite(loss)))
    assert bool(jnp.all(jnp.isfinite(r_vadv)))
    assert bool(jnp.all(jnp.isfinite(logit_m)))
    # Each row of r_vadv must have L2 norm ~= epsilon (F.normalize * epsilon).
    norms = jnp.sqrt(jnp.sum(r_vadv.reshape(B, -1) ** 2, axis=1))
    assert bool(jnp.all(jnp.abs(norms - EPSILON) < 5e-2 * EPSILON)), norms
    # KL(q || p) must be non-negative.
    assert bool(jnp.all(loss >= -1e-6)), loss

    print("KERNEL_OK")
</pallas_src>

<mosaic_0001>
module attributes {stable_mosaic.version = 11 : i64} {
  func.func @_vat_main_kernel(%arg0: i32, %arg1: memref<2x1024xf32, #tpu.memory_space<vmem>>, %arg2: memref<2x8xf32, #tpu.memory_space<vmem>>, %arg3: memref<8x1024xbf16, #tpu.memory_space<vmem>>, %arg4: memref<2x8xf32, #tpu.memory_space<vmem>>, %arg5: memref<2x1xf32, #tpu.memory_space<vmem>>, %arg6: memref<2x8xf32, #tpu.memory_space<vmem>>, %arg7: memref<2x8xf32, #tpu.memory_space<vmem>>, %arg8: memref<2x1xf32, #tpu.memory_space<vmem>>, %arg9: memref<8x8xf32, #tpu.memory_space<vmem>>) attributes {dimension_semantics = [#tpu.dimension_semantics<arbitrary>], iteration_bounds = array<i64: 1>, scalar_prefetch = 0 : i64, scratch_operands = 3 : i64, tpu.core_type = #tpu.core_type<tc>, window_params = [{transform_indices = @transform_0, window_bounds = array<i64: 2, 1024>}, {pipeline_mode = #tpu.pipeline_mode<synchronous>, transform_indices = @transform_1, window_bounds = array<i64: 2, 8>}, {transform_indices = @transform_2, window_bounds = array<i64: 8, 1024>}, {pipeline_mode = #tpu.pipeline_mode<synchronous>, transform_indices = @transform_3, window_bounds = array<i64: 2, 8>}, {pipeline_mode = #tpu.pipeline_mode<synchronous>, transform_indices = @transform_4, window_bounds = array<i64: 2, 1>}, {pipeline_mode = #tpu.pipeline_mode<synchronous>, transform_indices = @transform_5, window_bounds = array<i64: 2, 8>}]} {
    %c0_i32 = arith.constant 0 : i32
    %0 = arith.cmpi eq, %arg0, %c0_i32 : i32
    %1 = arith.extui %0 : i1 to i32
    %c0_i32_0 = arith.constant 0 : i32
    %2 = arith.cmpi ne, %1, %c0_i32_0 : i32
    scf.if %2 {
      %cst_20 = arith.constant 0.000000e+00 : f32
      %23 = vector.broadcast %cst_20 : f32 to vector<2x8xf32>
      %c0_21 = arith.constant 0 : index
      %c0_22 = arith.constant 0 : index
      %24 = vector.load %arg7[%c0_21, %c0_22] : memref<2x8xf32, #tpu.memory_space<vmem>>, vector<2x8xf32>
      tpu.vector_store %arg7[%c0_21, %c0_22], %23 {strides = array<i32>} : memref<2x8xf32, #tpu.memory_space<vmem>>, vector<2x8xf32>,
      %cst_23 = arith.constant 0.000000e+00 : f32
      %25 = vector.broadcast %cst_23 : f32 to vector<2x1xf32>
      %c0_24 = arith.constant 0 : index
      %c0_25 = arith.constant 0 : index
      %26 = vector.load %arg8[%c0_24, %c0_25] : memref<2x1xf32, #tpu.memory_space<vmem>>, vector<2x1xf32>
      tpu.vector_store %arg8[%c0_24, %c0_25], %25 {strides = array<i32>} : memref<2x1xf32, #tpu.memory_space<vmem>>, vector<2x1xf32>,
      %cst_26 = arith.constant 0.000000e+00 : f32
      %27 = vector.broadcast %cst_26 : f32 to vector<8x8xf32>
      %c0_27 = arith.constant 0 : index
      %c0_28 = arith.constant 0 : index
      %28 = vector.load %arg9[%c0_27, %c0_28] : memref<8x8xf32, #tpu.memory_space<vmem>>, vector<8x8xf32>
      tpu.vector_store %arg9[%c0_27, %c0_28], %27 {strides = array<i32>} : memref<8x8xf32, #tpu.memory_space<vmem>>, vector<8x8xf32>,
    } else {
    }
    %c0 = arith.constant 0 : index
    %c0_1 = arith.constant 0 : index
    %3 = vector.load %arg1[%c0, %c0_1] : memref<2x1024xf32, #tpu.memory_space<vmem>>, vector<2x1024xf32>
    %c0_2 = arith.constant 0 : index
    %c0_3 = arith.constant 0 : index
    %4 = vector.load %arg3[%c0_2, %c0_3] : memref<8x1024xbf16, #tpu.memory_space<vmem>>, vector<8x1024xbf16>
    %c0_4 = arith.constant 0 : index
    %c0_5 = arith.constant 0 : index
    %5 = vector.load %arg8[%c0_4, %c0_5] : memref<2x1xf32, #tpu.memory_space<vmem>>, vector<2x1xf32>
    %6 = arith.mulf %3, %3 : vector<2x1024xf32>
    %cst = arith.constant dense<0.000000e+00> : vector<2xf32>
    %7 = vector.multi_reduction <add>, %6, %cst [1] : vector<2x1024xf32> to vector<2xf32>
    %8 = vector.shape_cast %7 : vector<2xf32> to vector<2x1xf32>
    %9 = arith.addf %5, %8 : vector<2x1xf32>
    %c0_6 = arith.constant 0 : index
    %c0_7 = arith.constant 0 : index
    %10 = vector.load %arg8[%c0_6, %c0_7] : memref<2x1xf32, #tpu.memory_space<vmem>>, vector<2x1xf32>
    tpu.vector_store %arg8[%c0_6, %c0_7], %9 {strides = array<i32>} : memref<2x1xf32, #tpu.memory_space<vmem>>, vector<2x1xf32>,
    %c0_8 = arith.constant 0 : index
    %c0_9 = arith.constant 0 : index
    %11 = vector.load %arg7[%c0_8, %c0_9] : memref<2x8xf32, #tpu.memory_space<vmem>>, vector<2x8xf32>
    %12 = arith.truncf %3 : vector<2x1024xf32> to vector<2x1024xbf16>
    %cst_10 = arith.constant dense<0.000000e+00> : vector<2x8xf32>
    %13 = tpu.matmul %12, %4, %cst_10 {dimension_numbers = #tpu.dot_dimension_numbers<[1], [1], [0], [0], [0, 0, 1, 0], [], []>} : vector<2x1024xbf16>, vector<8x1024xbf16>, vector<2x8xf32> -> vector<2x8xf32>
    %14 = arith.addf %11, %13 : vector<2x8xf32>
    %c0_11 = arith.constant 0 : index
    %c0_12 = arith.constant 0 : index
    %15 = vector.load %arg7[%c0_11, %c0_12] : memref<2x8xf32, #tpu.memory_space<vmem>>, vector<2x8xf32>
    tpu.vector_store %arg7[%c0_11, %c0_12], %14 {strides = array<i32>} : memref<2x8xf32, #tpu.memory_space<vmem>>, vector<2x8xf32>,
    %c0_13 = arith.constant 0 : index
    %c0_14 = arith.constant 0 : index
    %16 = vector.load %arg9[%c0_13, %c0_14] : memref<8x8xf32, #tpu.memory_space<vmem>>, vector<8x8xf32>
    %cst_15 = arith.constant dense<0.000000e+00> : vector<8x8xf32>
    %17 = tpu.matmul %4, %4, %cst_15 {dimension_numbers = #tpu.dot_dimension_numbers<[1], [1], [0], [0], [0, 0, 1, 0], [], []>} : vector<8x1024xbf16>, vector<8x1024xbf16>, vector<8x8xf32> -> vector<8x8xf32>
    %18 = arith.addf %16, %17 : vector<8x8xf32>
    %c0_16 = arith.constant 0 : index
    %c0_17 = arith.constant 0 : index
    %19 = vector.load %arg9[%c0_16, %c0_17] : memref<8x8xf32, #tpu.memory_space<vmem>>, vector<8x8xf32>
    tpu.vector_store %arg9[%c0_16, %c0_17], %18 {strides = array<i32>} : memref<8x8xf32, #tpu.memory_space<vmem>>, vector<8x8xf32>,
    %c0_i32_18 = arith.constant 0 : i32
    %20 = arith.cmpi eq, %arg0, %c0_i32_18 : i32
    %21 = arith.extui %20 : i1 to i32
    %c0_i32_19 = arith.constant 0 : i32
    %22 = arith.cmpi ne, %21, %c0_i32_19 : i32
    scf.if %22 {
      %c0_20 = arith.constant 0 : index
      %c0_21 = arith.constant 0 : index
      %23 = vector.load %arg2[%c0_20, %c0_21] : memref<2x8xf32, #tpu.memory_space<vmem>>, vector<2x8xf32>
      %c0_22 = arith.constant 0 : index
      %c0_23 = arith.constant 0 : index
      %24 = vector.load %arg8[%c0_22, %c0_23] : memref<2x1xf32, #tpu.memory_space<vmem>>, vector<2x1xf32>
      %25 = math.sqrt %24 : vector<2x1xf32>
      %cst_24 = arith.constant 9.99999996E-13 : f32
      %26 = vector.broadcast %cst_24 : f32 to vector<2x1xf32>
      %27 = arith.maximumf %25, %26 : vector<2x1xf32>
      %cst_25 = arith.constant 1.000000e+00 : f32
      %28 = vector.broadcast %cst_25 : f32 to vector<2x1xf32>
      %29 = arith.divf %28, %27 : vector<2x1xf32>
      %cst_26 = arith.constant 9.99999997E-7 : f32
      %30 = vector.broadcast %cst_26 : f32 to vector<2x1xf32>
      %31 = arith.mulf %30, %29 : vector<2x1xf32>
      %c0_27 = arith.constant 0 : index
      %c0_28 = arith.constant 0 : index
      %32 = vector.load %arg7[%c0_27, %c0_28] : memref<2x8xf32, #tpu.memory_space<vmem>>, vector<2x8xf32>
      %33 = vector.broadcast %31 : vector<2x1xf32> to vector<2x8xf32>
      %34 = arith.mulf %33, %32 : vector<2x8xf32>
      %cst_29 = arith.constant dense<0xFF800000> : vector<2xf32>
      %35 = vector.multi_reduction <maximumf>, %23, %cst_29 [1] : vector<2x8xf32> to vector<2xf32>
      %36 = vector.shape_cast %35 : vector<2xf32> to vector<2x1xf32>
      %37 = vector.broadcast %36 : vector<2x1xf32> to vector<2x8xf32>
      %38 = arith.subf %23, %37 : vector<2x8xf32>
      %39 = math.exp %38 : vector<2x8xf32>
      %cst_30 = arith.constant dense<0.000000e+00> : vector<2xf32>
      %40 = vector.multi_reduction <add>, %39, %cst_30 [1] : vector<2x8xf32> to vector<2xf32>
      %41 = vector.shape_cast %40 : vector<2xf32> to vector<2x1xf32>
      %42 = vector.broadcast %41 : vector<2x1xf32> to vector<2x8xf32>
      %43 = arith.divf %39, %42 : vector<2x8xf32>
      %cst_31 = arith.constant 5.000000e-01 : f32
      %44 = vector.broadcast %cst_31 : f32 to vector<2x8xf32>
      %45 = arith.mulf %44, %34 : vector<2x8xf32>
      %cst_32 = arith.constant 1.000000e+00 : f32
      %46 = vector.broadcast %cst_32 : f32 to vector<2x8xf32>
      %47 = arith.addf %46, %45 : vector<2x8xf32>
      %48 = arith.mulf %34, %47 : vector<2x8xf32>
      %49 = arith.mulf %43, %48 : vector<2x8xf32>
      %cst_33 = arith.constant dense<0.000000e+00> : vector<2xf32>
      %50 = vector.multi_reduction <add>, %49, %cst_33 [1] : vector<2x8xf32> to vector<2xf32>
      %51 = vector.shape_cast %50 : vector<2xf32> to vector<2x1xf32>
      %52 = vector.broadcast %51 : vector<2x1xf32> to vector<2x8xf32>
      %53 = arith.subf %48, %52 : vector<2x8xf32>
      %54 = arith.mulf %43, %53 : vector<2x8xf32>
      %cst_34 = arith.constant 1.000000e+00 : f32
      %55 = vector.broadcast %cst_34 : f32 to vector<2x1xf32>
      %56 = arith.addf %55, %51 : vector<2x1xf32>
      %cst_35 = arith.constant 2.000000e+00 : f32
      %57 = vector.broadcast %cst_35 : f32 to vector<2x1xf32>
      %58 = arith.mulf %56, %57 : vector<2x1xf32>
      %59 = vector.broadcast %58 : vector<2x1xf32> to vector<2x8xf32>
      %60 = arith.divf %54, %59 : vector<2x8xf32>
      %c0_36 = arith.constant 0 : index
      %c0_37 = arith.constant 0 : index
      %61 = vector.load %arg9[%c0_36, %c0_37] : memref<8x8xf32, #tpu.memory_space<vmem>>, vector<8x8xf32>
      %cst_38 = arith.constant dense<0.000000e+00> : vector<2x8xf32>
      %62 = tpu.matmul %60, %61, %cst_38 {dimension_numbers = #tpu.dot_dimension_numbers<[1], [0], [0], [1], [0, 0, 1, 1], [], []>} : vector<2x8xf32>, vector<8x8xf32>, vector<2x8xf32> -> vector<2x8xf32>
      %63 = arith.mulf %62, %60 : vector<2x8xf32>
      %cst_39 = arith.constant dense<0.000000e+00> : vector<2xf32>
      %64 = vector.multi_reduction <add>, %63, %cst_39 [1] : vector<2x8xf32> to vector<2xf32>
      %65 = vector.shape_cast %64 : vector<2xf32> to vector<2x1xf32>
      %66 = math.sqrt %65 : vector<2x1xf32>
      %cst_40 = arith.constant 9.99999996E-13 : f32
      %67 = vector.broadcast %cst_40 : f32 to vector<2x1xf32>
      %68 = arith.maximumf %66, %67 : vector<2x1xf32>
      %cst_41 = arith.constant 5.000000e+00 : f32
      %69 = vector.broadcast %cst_41 : f32 to vector<2x1xf32>
      %70 = arith.divf %69, %68 : vector<2x1xf32>
      %71 = vector.broadcast %70 : vector<2x1xf32> to vector<2x8xf32>
      %72 = arith.mulf %71, %62 : vector<2x8xf32>
      %73 = arith.addf %23, %72 : vector<2x8xf32>
      %cst_42 = arith.constant dense<0xFF800000> : vector<2xf32>
      %74 = vector.multi_reduction <maximumf>, %23, %cst_42 [1] : vector<2x8xf32> to vector<2xf32>
      %75 = vector.shape_cast %74 : vector<2xf32> to vector<2x1xf32>
      %76 = vector.broadcast %75 : vector<2x1xf32> to vector<2x8xf32>
      %77 = arith.subf %23, %76 : vector<2x8xf32>
      %78 = math.exp %77 : vector<2x8xf32>
      %cst_43 = arith.constant dense<0.000000e+00> : vector<2xf32>
      %79 = vector.multi_reduction <add>, %78, %cst_43 [1] : vector<2x8xf32> to vector<2xf32>
      %80 = vector.shape_cast %79 : vector<2xf32> to vector<2x1xf32>
      %81 = math.log %80 : vector<2x1xf32>
      %82 = vector.broadcast %81 : vector<2x1xf32> to vector<2x8xf32>
      %83 = arith.subf %77, %82 : vector<2x8xf32>
      %cst_44 = arith.constant dense<0xFF800000> : vector<2xf32>
      %84 = vector.multi_reduction <maximumf>, %73, %cst_44 [1] : vector<2x8xf32> to vector<2xf32>
      %85 = vector.shape_cast %84 : vector<2xf32> to vector<2x1xf32>
      %86 = vector.broadcast %85 : vector<2x1xf32> to vector<2x8xf32>
      %87 = arith.subf %73, %86 : vector<2x8xf32>
      %88 = math.exp %87 : vector<2x8xf32>
      %cst_45 = arith.constant dense<0.000000e+00> : vector<2xf32>
      %89 = vector.multi_reduction <add>, %88, %cst_45 [1] : vector<2x8xf32> to vector<2xf32>
      %90 = vector.shape_cast %89 : vector<2xf32> to vector<2x1xf32>
      %91 = math.log %90 : vector<2x1xf32>
      %92 = vector.broadcast %91 : vector<2x1xf32> to vector<2x8xf32>
      %93 = arith.subf %87, %92 : vector<2x8xf32>
      %94 = arith.subf %83, %93 : vector<2x8xf32>
      %95 = arith.mulf %43, %94 : vector<2x8xf32>
      %cst_46 = arith.constant dense<0.000000e+00> : vector<2xf32>
      %96 = vector.multi_reduction <add>, %95, %cst_46 [1] : vector<2x8xf32> to vector<2xf32>
      %97 = vector.shape_cast %96 : vector<2xf32> to vector<2x1xf32>
      %c0_47 = arith.constant 0 : index
      %c0_48 = arith.constant 0 : index
      %98 = vector.load %arg5[%c0_47, %c0_48] : memref<2x1xf32, #tpu.memory_space<vmem>>, vector<2x1xf32>
      tpu.vector_store %arg5[%c0_47, %c0_48], %97 {strides = array<i32>} : memref<2x1xf32, #tpu.memory_space<vmem>>, vector<2x1xf32>,
      %c0_49 = arith.constant 0 : index
      %c0_50 = arith.constant 0 : index
      %99 = vector.load %arg6[%c0_49, %c0_50] : memref<2x8xf32, #tpu.memory_space<vmem>>, vector<2x8xf32>
      tpu.vector_store %arg6[%c0_49, %c0_50], %73 {strides = array<i32>} : memref<2x8xf32, #tpu.memory_space<vmem>>, vector<2x8xf32>,
      %100 = vector.broadcast %70 : vector<2x1xf32> to vector<2x8xf32>
      %101 = arith.mulf %100, %60 : vector<2x8xf32>
      %c0_51 = arith.constant 0 : index
      %c0_52 = arith.constant 0 : index
      %102 = vector.load %arg4[%c0_51, %c0_52] : memref<2x8xf32, #tpu.memory_space<vmem>>, vector<2x8xf32>
      tpu.vector_store %arg4[%c0_51, %c0_52], %101 {strides = array<i32>} : memref<2x8xf32, #tpu.memory_space<vmem>>, vector<2x8xf32>,
    } else {
    }
    return
  }
  func.func @transform_0(%arg0: i32) -> (i32, i32) {
    %c0_i32 = arith.constant 0 : i32
    %c0_i32_0 = arith.constant 0 : i32
    return %c0_i32, %arg0 : i32, i32
  }
  func.func @transform_1(%arg0: i32) -> (i32, i32) {
    %c0_i32 = arith.constant 0 : i32
    %c0_i32_0 = arith.constant 0 : i32
    %c0_i32_1 = arith.constant 0 : i32
    return %c0_i32, %c0_i32_0 : i32, i32
  }
  func.func @transform_2(%arg0: i32) -> (i32, i32) {
    %c0_i32 = arith.constant 0 : i32
    %c0_i32_0 = arith.constant 0 : i32
    return %c0_i32, %arg0 : i32, i32
  }
  func.func @transform_3(%arg0: i32) -> (i32, i32) {
    %c0_i32 = arith.constant 0 : i32
    %c0_i32_0 = arith.constant 0 : i32
    %c0_i32_1 = arith.constant 0 : i32
    return %c0_i32, %c0_i32_0 : i32, i32
  }
  func.func @transform_4(%arg0: i32) -> (i32, i32) {
    %c0_i32 = arith.constant 0 : i32
    %c0_i32_0 = arith.constant 0 : i32
    %c0_i32_1 = arith.constant 0 : i32
    return %c0_i32, %c0_i32_0 : i32, i32
  }
  func.func @transform_5(%arg0: i32) -> (i32, i32) {
    %c0_i32 = arith.constant 0 : i32
    %c0_i32_0 = arith.constant 0 : i32
    %c0_i32_1 = arith.constant 0 : i32
    return %c0_i32, %c0_i32_0 : i32, i32
  }
}

</mosaic_0001>

<llo_original>
// kernel: tpu_custom_call.1
$region0: #{tpu_custom_call.1}
  #allocation0 [shape = 'u32[]', space=smem, size = 0x4, offset = 0x4, fixed_abs, tag = 'smem constant byte address 0x4 - core index']
  #allocation1 [shape = 'u32[72,128]{1,0:T(1,128)}', space=vmem, size = 0x9000, scoped, tag = 'internal scratch']
  #allocation2 [shape = 'f32[2,8]{1,0:T(2,128)}', space=vmem, size = 0x400, scoped, tag = 'scratch operand']
  #allocation3 [shape = 'f32[2,1]{1,0:T(2,128)}', space=vmem, size = 0x400, scoped, tag = 'scratch operand']
  #allocation4 [shape = 'f32[8,8]{1,0:T(8,128)}', space=vmem, size = 0x1000, scoped, tag = 'scratch operand']
  %s0 = inlined_call_operand.hbm [shape: f32[2,1024], index: 0, kind: input, shape index: {}]
  %s1 = inlined_call_operand.hbm [shape: f32[2,8], index: 1, kind: input, shape index: {}]
  %s2 = inlined_call_operand.hbm [shape: bf16[8,1024], index: 2, kind: input, shape index: {}]
  %s3 = inlined_call_operand.hbm [shape: f32[2,8], index: 3, kind: output, shape index: {0}]
  %s4 = inlined_call_operand.vmem [shape: f32[2,1], index: 4, kind: output, shape index: {1}]
  %s5 = inlined_call_operand.hbm [shape: f32[2,8], index: 5, kind: output, shape index: {2}]
  %6 = xla_tuple %s3, %s4, %s5
  %s7 = sld [smem:[#allocation0]]
  $region58: #{tpu_custom_call.1} parent=0
    _
  %s9 = ssub.s32 1, %s7
  %s10 = scalar_select 0, %s9, %s7
  $region1: #{tpu_custom_call.1} parent=0
    #allocation5 [shape = 'u8[8192]{0}', space=vmem, size = 0x2000, scoped, tag = 'input window, operand 0, single buffered']
    #allocation6 [shape = 's32[1]{0}', space=sflag, size = 0x4, scoped, tag = 'scoped memory for tpu_custom_call.1']
    #allocation7 [shape = 's32[1]{0}', space=sflag, size = 0x4, scoped, tag = 'scoped memory for tpu_custom_call.1']
    #allocation8 [shape = 'u8[1024]{0}', space=vmem, size = 0x400, scoped, tag = 'input window, operand 1, single buffered']
    #allocation9 [shape = 's32[1]{0}', space=sflag, size = 0x4, scoped, tag = 'scoped memory for tpu_custom_call.1']
    #allocation10 [shape = 'u8[16384]{0}', space=vmem, size = 0x4000, scoped, tag = 'input window, operand 2, single buffered']
    #allocation11 [shape = 'u8[1024]{0}', space=vmem, size = 0x400, scoped, tag = 'output window, operand 0, single buffered']
    #allocation12 [shape = 'u8[1024]{0}', space=vmem, size = 0x400, scoped, tag = 'output window, operand 2, single buffered']
    #allocation13 [shape = 's32[1]{0}', space=sflag, size = 0x4, scoped, tag = 'scoped memory for tpu_custom_call.1']
    %11 = vsyncpa [#allocation6], 0
    %12 = vsyncpa [#allocation9], 0
    %13 = vsyncpa [#allocation7], 0
    %14 = vsyncpa [#allocation13], 0
    // Predicated region
    $region2: #{tpu_custom_call.1} parent=1 // pred_check
      _
    $region3: #{tpu_custom_call.1} parent=1 // pred_check_branch
      %16 = sbr.rel (0) target = $region5
    $region4: #{tpu_custom_call.1} parent=1 // pred_region
      %18 = vsyncadd [#allocation6], 0
      %s20 = sshll.u32 %s0, 4
      %s21 = int_to_ptr.hbm [resolvable:$true] %s20
      %s22 = sshll.u32 [#allocation5], 4
      %s23 = int_to_ptr.vmem [resolvable:$true] %s22
      %25 = dma.hbm_to_vmem [thread:$0]  %s21, 256, %s23, [#allocation6]
    $region5: #{tpu_custom_call.1} parent=1 // pred_fallthru
      _
    // Predicated region
    $region6: #{tpu_custom_call.1} parent=1 // pred_check
      _
    $region7: #{tpu_custom_call.1} parent=1 // pred_check_branch
      %27 = sbr.rel (0) target = $region9
    $region8: #{tpu_custom_call.1} parent=1 // pred_region
      %29 = vsyncadd [#allocation9], 0
      %s31 = sshll.u32 %s1, 4
      %s32 = int_to_ptr.hbm [resolvable:$true] %s31
      %s33 = sshll.u32 [#allocation8], 4
      %s34 = int_to_ptr.vmem [resolvable:$true] %s33
      %36 = dma.hbm_to_vmem [thread:$0]  %s32, 32, %s34, [#allocation9]
    $region9: #{tpu_custom_call.1} parent=1 // pred_fallthru
      _
    // Predicated region
    $region10: #{tpu_custom_call.1} parent=1 // pred_check
      _
    $region11: #{tpu_custom_call.1} parent=1 // pred_check_branch
      %38 = sbr.rel (0) target = $region13
    $region12: #{tpu_custom_call.1} parent=1 // pred_region
      %40 = vsyncadd [#allocation9], 0
      %s42 = sshll.u32 %s2, 4
      %s43 = int_to_ptr.hbm [resolvable:$true] %s42
      %s44 = sshll.u32 [#allocation10], 4
      %s45 = int_to_ptr.vmem [resolvable:$true] %s44
      %47 = dma.hbm_to_vmem [thread:$0]  %s43, 512, %s45, [#allocation9]
    $region13: #{tpu_custom_call.1} parent=1 // pred_fallthru
      _
    // Predicated region
    $region14: #{tpu_custom_call.1} parent=1 // pred_check
      _
    $region15: #{tpu_custom_call.1} parent=1 // pred_check_branch
      %49 = sbr.rel (0) target = $region17
    $region16: #{tpu_custom_call.1} parent=1 // pred_region
      %51 = dma.done [#allocation6], 256
    $region17: #{tpu_custom_call.1} parent=1 // pred_fallthru
      _
    // Predicated region
    $region18: #{tpu_custom_call.1} parent=1 // pred_check
      _
    $region19: #{tpu_custom_call.1} parent=1 // pred_check_branch
      %53 = sbr.rel (0) target = $region21
    $region20: #{tpu_custom_call.1} parent=1 // pred_region
      %55 = dma.done [#allocation9], 32
    $region21: #{tpu_custom_call.1} parent=1 // pred_fallthru
      _
    // Predicated region
    $region22: #{tpu_custom_call.1} parent=1 // pred_check
      _
    $region23: #{tpu_custom_call.1} parent=1 // pred_check_branch
      %57 = sbr.rel (0) target = $region25
    $region24: #{tpu_custom_call.1} parent=1 // pred_region
      %59 = dma.done [#allocation9], 512
    $region25: #{tpu_custom_call.1} parent=1 // pred_fallthru
      _
    %p61 = scmp.eq.s32.totalorder 0, 0
    // Predicated region
    $region26: #{tpu_custom_call.1} parent=1 // pred_check
      %p62 = pneg %p61
    $region27: #{tpu_custom_call.1} parent=1 // pred_check_branch
      %64 = sbr.rel (%p62) target = $region29
    $region28: #{tpu_custom_call.1} parent=1 // pred_region
      %vm65 = vcmask 58368
      %66 = vst.msk [vmem:[#allocation2] sm:$0x3] %vm65, 0.0
      %vm67 = vcmask 1024
      %68 = vst.msk [vmem:[#allocation3] sm:$0x3] %vm67, 0.0
      %vm69 = vcmask 64512
      %70 = vst.msk [vmem:[#allocation4] sm:$0xff] %vm69, 0.0
    $region29: #{tpu_custom_call.1} parent=1 // pred_fallthru
      _
    %v71 = vld [vmem:[#allocation5] sm:$0xff]
    %v72 = vld [vmem:[#allocation5 + $0x8] sm:$0xff]
    %v73 = vld [vmem:[#allocation10] sm:$0xff]
    %v74 = vld [vmem:[#allocation10 + $0x8] sm:$0xff]
    %v75 = vld [vmem:[#allocation10 + $0x10] sm:$0xff]
    %v76 = vld [vmem:[#allocation10 + $0x18] sm:$0xff]
    %v77 = vld [vmem:[#allocation3] sm:$0x3]
    %v78 = vmul.f32 %v71, %v71
    %v79 = vmul.f32 %v72, %v72
    %82 = vst [vmem:[#allocation1] ss:$4 sm:$0xff] %v78
    %s83 = scalar_lea.vmem [#allocation1], 32
    %84 = vst [vmem:[%s83] ss:$4 sm:$0xff] %v79
    %v85 = vld.sshfl [vmem:[#allocation1] sm:$0xff pattern:$0x73625140]
    %v86 = vld.sshfl [vmem:[#allocation1 + $0x8] sm:$0xff pattern:$0x73625140]
    %v87 = vld.sshfl [vmem:[#allocation1 + $0x10] sm:$0xff pattern:$0x73625140]
    %v88 = vld.sshfl [vmem:[#allocation1 + $0x18] sm:$0xff pattern:$0x73625140]
    %v89 = vld.sshfl [vmem:[#allocation1 + $0x20] sm:$0xff pattern:$0x73625140]
    %v90 = vld.sshfl [vmem:[#allocation1 + $0x28] sm:$0xff pattern:$0x73625140]
    %v91 = vld.sshfl [vmem:[#allocation1 + $0x30] sm:$0xff pattern:$0x73625140]
    %v92 = vld.sshfl [vmem:[#allocation1 + $0x38] sm:$0xff pattern:$0x73625140]
    %vm101 = vcmask 1041408
    %v102 = vsel %vm101, %v85, 0.0
    %v103 = vsel %vm101, %v86, 0.0
    %v104 = vadd.f32 %v102, %v103
    %v105 = vsel %vm101, %v87, 0.0
    %v106 = vadd.f32 %v104, %v105
    %v107 = vsel %vm101, %v88, 0.0
    %v108 = vadd.f32 %v106, %v107
    %v109 = vsel %vm101, %v89, 0.0
    %v110 = vadd.f32 %v108, %v109
    %v111 = vsel %vm101, %v90, 0.0
    %v112 = vadd.f32 %v110, %v111
    %v113 = vsel %vm101, %v91, 0.0
    %v114 = vadd.f32 %v112, %v113
    %v115 = vsel %vm101, %v92, 0.0
    %v116 = vadd.f32 %v114, %v115
    %117 = vadd.xlane.f32.xlu0 %v116
    %v118 = vpop.xlane.xlu0 %117
    %v119 = vadd.f32 %v77, %v118
    %vm120 = vcmask 1024
    %121 = vst.msk [vmem:[#allocation3] sm:$0x3] %vm120, %v119
    %v122 = vld [vmem:[#allocation2] sm:$0x3]
    %125 = vst [vmem:[#allocation1] ss:$4 sm:$0xff] %v71
    %s126 = scalar_lea.vmem [#allocation1], 32
    %127 = vst [vmem:[%s126] ss:$4 sm:$0xff] %v72
    %v128 = vld.sshfl [vmem:[#allocation1] sm:$0xff pattern:$0x73625140]
    %v129 = vld.sshfl [vmem:[#allocation1 + $0x8] sm:$0xff pattern:$0x73625140]
    %v130 = vld.sshfl [vmem:[#allocation1 + $0x10] sm:$0xff pattern:$0x73625140]
    %v131 = vld.sshfl [vmem:[#allocation1 + $0x18] sm:$0xff pattern:$0x73625140]
    %v132 = vld.sshfl [vmem:[#allocation1 + $0x20] sm:$0xff pattern:$0x73625140]
    %v133 = vld.sshfl [vmem:[#allocation1 + $0x28] sm:$0xff pattern:$0x73625140]
    %v134 = vld.sshfl [vmem:[#allocation1 + $0x30] sm:$0xff pattern:$0x73625140]
    %v135 = vld.sshfl [vmem:[#allocation1 + $0x38] sm:$0xff pattern:$0x73625140]
    %v144 = vpack.c.bf16 %v128, %v128
    %v145 = vpack.c.bf16 %v129, %v129
    %v146 = vpack.c.bf16 %v130, %v130
    %v147 = vpack.c.bf16 %v131, %v131
    %v148 = vpack.c.bf16 %v132, %v132
    %v149 = vpack.c.bf16 %v133, %v133
    %v150 = vpack.c.bf16 %v134, %v134
    %v151 = vpack.c.bf16 %v135, %v135
    %v156 = vunpack.c.l.b16 %v73
    %v157 = vunpack.c.h.b16 %v73
    %v158 = vunpack.c.l.b16 %v74
    %v159 = vunpack.c.h.b16 %v74
    %v160 = vunpack.c.l.b16 %v75
    %v161 = vunpack.c.h.b16 %v75
    %v162 = vunpack.c.l.b16 %v76
    %v163 = vunpack.c.h.b16 %v76
    %v164 = vpack.c.b16 %v156, %v156
    %v165 = vpack.c.b16 %v157, %v157
    %v166 = vpack.c.b16 %v158, %v158
    %v167 = vpack.c.b16 %v159, %v159
    %v168 = vpack.c.b16 %v160, %v160
    %v169 = vpack.c.b16 %v161, %v161
    %v170 = vpack.c.b16 %v162, %v162
    %v171 = vpack.c.b16 %v163, %v163
    %180 = vmatpush.bf16.xpose.msra.mxu0 0
    %181 = vmatpush.bf16.xpose.msra.mxu0 0
    %182 = vmatpush.bf16.xpose.msra.mxu0 0
    %183 = vmatpush.bf16.xpose.msra.mxu0 0
    %184 = vmatpush.bf16.xpose.msra.mxu0 0
    %185 = vmatpush.bf16.xpose.msra.mxu0 0
    %186 = vmatpush.bf16.xpose.msra.mxu0 0
    %187 = vmatpush.bf16.xpose.msra.mxu0 %v164
    %188 = vmatmul.bf16.gmra.mxu0 %v144
    %v189 = vpop.f32.mrf.mxu0
    %v190 = vadd.f32 0.0, %v189
    %v191 = vpop.f32.mrf.mxu0
    %192 = vdwg.mxu0
    %193 = vmatpush.bf16.xpose.msra.mxu0 0
    %194 = vmatpush.bf16.xpose.msra.mxu0 0
    %195 = vmatpush.bf16.xpose.msra.mxu0 0
    %196 = vmatpush.bf16.xpose.msra.mxu0 0
    %197 = vmatpush.bf16.xpose.msra.mxu0 0
    %198 = vmatpush.bf16.xpose.msra.mxu0 0
    %199 = vmatpush.bf16.xpose.msra.mxu0 0
    %200 = vmatpush.bf16.xpose.msra.mxu0 %v165
    %201 = vmatmul.bf16.gmra.mxu0 %v145
    %v202 = vpop.f32.mrf.mxu0
    %v203 = vadd.f32 %v190, %v202
    %v204 = vpop.f32.mrf.mxu0
    %205 = vdwg.mxu0
    %206 = vmatpush.bf16.xpose.msra.mxu0 0
    %207 = vmatpush.bf16.xpose.msra.mxu0 0
    %208 = vmatpush.bf16.xpose.msra.mxu0 0
    %209 = vmatpush.bf16.xpose.msra.mxu0 0
    %210 = vmatpush.bf16.xpose.msra.mxu0 0
    %211 = vmatpush.bf16.xpose.msra.mxu0 0
    %212 = vmatpush.bf16.xpose.msra.mxu0 0
    %213 = vmatpush.bf16.xpose.msra.mxu0 %v166
    %214 = vmatmul.bf16.gmra.mxu0 %v146
    %v215 = vpop.f32.mrf.mxu0
    %v216 = vadd.f32 %v203, %v215
    %v217 = vpop.f32.mrf.mxu0
    %218 = vdwg.mxu0
    %219 = vmatpush.bf16.xpose.msra.mxu0 0
    %220 = vmatpush.bf16.xpose.msra.mxu0 0
    %221 = vmatpush.bf16.xpose.msra.mxu0 0
    %222 = vmatpush.bf16.xpose.msra.mxu0 0
    %223 = vmatpush.bf16.xpose.msra.mxu0 0
    %224 = vmatpush.bf16.xpose.msra.mxu0 0
    %225 = vmatpush.bf16.xpose.msra.mxu0 0
    %226 = vmatpush.bf16.xpose.msra.mxu0 %v167
    %227 = vmatmul.bf16.gmra.mxu0 %v147
    %v228 = vpop.f32.mrf.mxu0
    %v229 = vadd.f32 %v216, %v228
    %v230 = vpop.f32.mrf.mxu0
    %231 = vdwg.mxu0
    %232 = vmatpush.bf16.xpose.msra.mxu0 0
    %233 = vmatpush.bf16.xpose.msra.mxu0 0
    %234 = vmatpush.bf16.xpose.msra.mxu0 0
    %235 = vmatpush.bf16.xpose.msra.mxu0 0
    %236 = vmatpush.bf16.xpose.msra.mxu0 0
    %237 = vmatpush.bf16.xpose.msra.mxu0 0
    %238 = vmatpush.bf16.xpose.msra.mxu0 0
    %239 = vmatpush.bf16.xpose.msra.mxu0 %v168
    %240 = vmatmul.bf16.gmra.mxu0 %v148
    %v241 = vpop.f32.mrf.mxu0
    %v242 = vadd.f32 %v229, %v241
    %v243 = vpop.f32.mrf.mxu0
    %244 = vdwg.mxu0
    %245 = vmatpush.bf16.xpose.msra.mxu0 0
    %246 = vmatpush.bf16.xpose.msra.mxu0 0
    %247 = vmatpush.bf16.xpose.msra.mxu0 0
    %248 = vmatpush.bf16.xpose.msra.mxu0 0
    %249 = vmatpush.bf16.xpose.msra.mxu0 0
    %250 = vmatpush.bf16.xpose.msra.mxu0 0
    %251 = vmatpush.bf16.xpose.msra.mxu0 0
    %252 = vmatpush.bf16.xpose.msra.mxu0 %v169
    %253 = vmatmul.bf16.gmra.mxu0 %v149
    %v254 = vpop.f32.mrf.mxu0
    %v255 = vadd.f32 %v242, %v254
    %v256 = vpop.f32.mrf.mxu0
    %257 = vdwg.mxu0
    %258 = vmatpush.bf16.xpose.msra.mxu0 0
    %259 = vmatpush.bf16.xpose.msra.mxu0 0
    %260 = vmatpush.bf16.xpose.msra.mxu0 0
    %261 = vmatpush.bf16.xpose.msra.mxu0 0
    %262 = vmatpush.bf16.xpose.msra.mxu0 0
    %263 = vmatpush.bf16.xpose.msra.mxu0 0
    %264 = vmatpush.bf16.xpose.msra.mxu0 0
    %265 = vmatpush.bf16.xpose.msra.mxu0 %v170
    %266 = vmatmul.bf16.gmra.mxu0 %v150
    %v267 = vpop.f32.mrf.mxu0
    %v268 = vadd.f32 %v255, %v267
    %v269 = vpop.f32.mrf.mxu0
    %270 = vdwg.mxu0
    %271 = vmatpush.bf16.xpose.msra.mxu0 0
    %272 = vmatpush.bf16.xpose.msra.mxu0 0
    %273 = vmatpush.bf16.xpose.msra.mxu0 0
    %274 = vmatpush.bf16.xpose.msra.mxu0 0
    %275 = vmatpush.bf16.xpose.msra.mxu0 0
    %276 = vmatpush.bf16.xpose.msra.mxu0 0
    %277 = vmatpush.bf16.xpose.msra.mxu0 0
    %278 = vmatpush.bf16.xpose.msra.mxu0 %v171
    %279 = vmatmul.bf16.gmra.mxu0 %v151
    %v280 = vpop.f32.mrf.mxu0
    %v281 = vadd.f32 %v268, %v280
    %v282 = vpop.f32.mrf.mxu0
    %283 = vdwg.mxu0
    %v284 = vadd.f32 %v122, %v281
    %vm285 = vcmask 58368
    %286 = vst.msk [vmem:[#allocation2] sm:$0x3] %vm285, %v284
    %v287 = vld [vmem:[#allocation4] sm:$0xff]
    %288 = vmatpush.bf16.xpose.msra.mxu0 0
    %289 = vmatpush.bf16.xpose.msra.mxu0 0
    %290 = vmatpush.bf16.xpose.msra.mxu0 0
    %291 = vmatpush.bf16.xpose.msra.mxu0 0
    %292 = vmatpush.bf16.xpose.msra.mxu0 0
    %293 = vmatpush.bf16.xpose.msra.mxu0 0
    %294 = vmatpush.bf16.xpose.msra.mxu0 0
    %295 = vmatpush.bf16.xpose.msra.mxu0 %v164
    %296 = vmatmul.bf16.gmra.mxu0 %v164
    %v297 = vpop.f32.mrf.mxu0
    %v298 = vadd.f32 0.0, %v297
    %v299 = vpop.f32.mrf.mxu0
    %300 = vdwg.mxu0
    %301 = vmatpush.bf16.xpose.msra.mxu0 0
    %302 = vmatpush.bf16.xpose.msra.mxu0 0
    %303 = vmatpush.bf16.xpose.msra.mxu0 0
    %304 = vmatpush.bf16.xpose.msra.mxu0 0
    %305 = vmatpush.bf16.xpose.msra.mxu0 0
    %306 = vmatpush.bf16.xpose.msra.mxu0 0
    %307 = vmatpush.bf16.xpose.msra.mxu0 0
    %308 = vmatpush.bf16.xpose.msra.mxu0 %v165
    %309 = vmatmul.bf16.gmra.mxu0 %v165
    %v310 = vpop.f32.mrf.mxu0
    %v311 = vadd.f32 %v298, %v310
    %v312 = vpop.f32.mrf.mxu0
    %313 = vdwg.mxu0
    %314 = vmatpush.bf16.xpose.msra.mxu0 0
    %315 = vmatpush.bf16.xpose.msra.mxu0 0
    %316 = vmatpush.bf16.xpose.msra.mxu0 0
    %317 = vmatpush.bf16.xpose.msra.mxu0 0
    %318 = vmatpush.bf16.xpose.msra.mxu0 0
    %319 = vmatpush.bf16.xpose.msra.mxu0 0
    %320 = vmatpush.bf16.xpose.msra.mxu0 0
    %321 = vmatpush.bf16.xpose.msra.mxu0 %v166
    %322 = vmatmul.bf16.gmra.mxu0 %v166
    %v323 = vpop.f32.mrf.mxu0
    %v324 = vadd.f32 %v311, %v323
    %v325 = vpop.f32.mrf.mxu0
    %326 = vdwg.mxu0
    %327 = vmatpush.bf16.xpose.msra.mxu0 0
    %328 = vmatpush.bf16.xpose.msra.mxu0 0
    %329 = vmatpush.bf16.xpose.msra.mxu0 0
    %330 = vmatpush.bf16.xpose.msra.mxu0 0
    %331 = vmatpush.bf16.xpose.msra.mxu0 0
    %332 = vmatpush.bf16.xpose.msra.mxu0 0
    %333 = vmatpush.bf16.xpose.msra.mxu0 0
    %334 = vmatpush.bf16.xpose.msra.mxu0 %v167
    %335 = vmatmul.bf16.gmra.mxu0 %v167
    %v336 = vpop.f32.mrf.mxu0
    %v337 = vadd.f32 %v324, %v336
    %v338 = vpop.f32.mrf.mxu0
    %339 = vdwg.mxu0
    %340 = vmatpush.bf16.xpose.msra.mxu0 0
    %341 = vmatpush.bf16.xpose.msra.mxu0 0
    %342 = vmatpush.bf16.xpose.msra.mxu0 0
    %343 = vmatpush.bf16.xpose.msra.mxu0 0
    %344 = vmatpush.bf16.xpose.msra.mxu0 0
    %345 = vmatpush.bf16.xpose.msra.mxu0 0
    %346 = vmatpush.bf16.xpose.msra.mxu0 0
    %347 = vmatpush.bf16.xpose.msra.mxu0 %v168
    %348 = vmatmul.bf16.gmra.mxu0 %v168
    %v349 = vpop.f32.mrf.mxu0
    %v350 = vadd.f32 %v337, %v349
    %v351 = vpop.f32.mrf.mxu0
    %352 = vdwg.mxu0
    %353 = vmatpush.bf16.xpose.msra.mxu0 0
    %354 = vmatpush.bf16.xpose.msra.mxu0 0
    %355 = vmatpush.bf16.xpose.msra.mxu0 0
    %356 = vmatpush.bf16.xpose.msra.mxu0 0
    %357 = vmatpush.bf16.xpose.msra.mxu0 0
    %358 = vmatpush.bf16.xpose.msra.mxu0 0
    %359 = vmatpush.bf16.xpose.msra.mxu0 0
    %360 = vmatpush.bf16.xpose.msra.mxu0 %v169
    %361 = vmatmul.bf16.gmra.mxu0 %v169
    %v362 = vpop.f32.mrf.mxu0
    %v363 = vadd.f32 %v350, %v362
    %v364 = vpop.f32.mrf.mxu0
    %365 = vdwg.mxu0
    %366 = vmatpush.bf16.xpose.msra.mxu0 0
    %367 = vmatpush.bf16.xpose.msra.mxu0 0
    %368 = vmatpush.bf16.xpose.msra.mxu0 0
    %369 = vmatpush.bf16.xpose.msra.mxu0 0
    %370 = vmatpush.bf16.xpose.msra.mxu0 0
    %371 = vmatpush.bf16.xpose.msra.mxu0 0
    %372 = vmatpush.bf16.xpose.msra.mxu0 0
    %373 = vmatpush.bf16.xpose.msra.mxu0 %v170
    %374 = vmatmul.bf16.gmra.mxu0 %v170
    %v375 = vpop.f32.mrf.mxu0
    %v376 = vadd.f32 %v363, %v375
    %v377 = vpop.f32.mrf.mxu0
    %378 = vdwg.mxu0
    %379 = vmatpush.bf16.xpose.msra.mxu0 0
    %380 = vmatpush.bf16.xpose.msra.mxu0 0
    %381 = vmatpush.bf16.xpose.msra.mxu0 0
    %382 = vmatpush.bf16.xpose.msra.mxu0 0
    %383 = vmatpush.bf16.xpose.msra.mxu0 0
    %384 = vmatpush.bf16.xpose.msra.mxu0 0
    %385 = vmatpush.bf16.xpose.msra.mxu0 0
    %386 = vmatpush.bf16.xpose.msra.mxu0 %v171
    %387 = vmatmul.bf16.gmra.mxu0 %v171
    %v388 = vpop.f32.mrf.mxu0
    %v389 = vadd.f32 %v376, %v388
    %v390 = vpop.f32.mrf.mxu0
    %391 = vdwg.mxu0
    %v392 = vadd.f32 %v287, %v389
    %vm393 = vcmask 64512
    %394 = vst.msk [vmem:[#allocation4] sm:$0xff] %vm393, %v392
    // Predicated region
    $region30: #{tpu_custom_call.1} parent=1 // pred_check
      %p395 = pneg %p61
    $region31: #{tpu_custom_call.1} parent=1 // pred_check_branch
      %397 = sbr.rel (%p395) target = $region33
    $region32: #{tpu_custom_call.1} parent=1 // pred_region
      %v398 = vld [vmem:[#allocation8] sm:$0x3]
      %v399 = vld [vmem:[#allocation3] sm:$0x3]
      %v400 = vrsqrt.pop %v399
      %v401 = vmul.f32 %v400, %v399
      %v402 = vmul.f32 %v401, %v400
      %v403 = vmul.f32 0.5, %v402
      %v404 = vsub.f32 1.5, %v403
      %v405 = vmul.f32 %v400, %v404
      %v406 = vmul.f32 %v399, %v405
      %vm407 = vcmp.eq.f32.partialorder %v399, inf
      %v408 = vsel %vm407, %v399, %v406
      %vm409 = vcmp.eq.f32.partialorder %v399, 0.0
      %v410 = vand.u32 %v399, 2147483648
      %v411 = vsel %vm409, %v410, %v408
      %v412 = vmax.f32 %v411, 1e-12
      %v413 = vrcp.pop %v412
      %v414 = vmul.f32 %v412, %v413
      %v415 = vsub.f32 1.0, %v414
      %v416 = vmul.f32 %v413, %v415
      %v417 = vadd.f32 %v413, %v416
      %vm418 = vweird.f32 %v412
      %vm419 = vweird.f32 %v413
      %vm420 = vmor %vm418, %vm419
      %v421 = vsel %vm420, %v413, %v417
      %v422 = vand.u32 2147483647, %v412
      %vm423 = vcmp.eq.f32.partialorder %v422, 8.507059e+37
      %v424 = vand.u32 %v412, 2147483648
      %v425 = vor.u32 1.1754944e-38, %v424
      %v426 = vsel %vm423, %v425, %v421
      %v427 = vmul.f32 1.0, %v426
      %v428 = vmul.f32 %v427, 1e-06
      %v429 = vld [vmem:[#allocation2] sm:$0x3]
      %431 = vset.pattern.permute.xlu0 0
      %432 = vperm.xlu0 %431, %v428
      %v433 = vpop.permute.xlu0 %432
      %v435 = vmul.f32 %v433, %v429
      %v436 = vsel %vm285, %v398, -inf
      %437 = vmax.xlane.f32.xlu0 %v436
      %v438 = vpop.xlane.xlu0 %437
      %v439 = vsub.f32 %v398, %v438
      %v440 = vmul.f32 %v439, 1.442695
      %v441 = vpow.pop %v440
      %v442 = vsel %vm285, %v441, 0.0
      %443 = vadd.xlane.f32.xlu0 %v442
      %v444 = vpop.xlane.xlu0 %443
      %v445 = vrcp.pop %v444
      %v446 = vmul.f32 %v444, %v445
      %v447 = vsub.f32 1.0, %v446
      %v448 = vmul.f32 %v445, %v447
      %v449 = vadd.f32 %v445, %v448
      %vm450 = vweird.f32 %v444
      %vm451 = vweird.f32 %v445
      %vm452 = vmor %vm450, %vm451
      %v453 = vsel %vm452, %v445, %v449
      %v454 = vand.u32 2147483647, %v444
      %vm455 = vcmp.eq.f32.partialorder %v454, 8.507059e+37
      %v456 = vand.u32 %v444, 2147483648
      %v457 = vor.u32 1.1754944e-38, %v456
      %v458 = vsel %vm455, %v457, %v453
      %v459 = vmul.f32 %v441, %v458
      %v460 = vmul.f32 %v435, 0.5
      %v461 = vadd.f32 %v460, 1.0
      %v462 = vmul.f32 %v435, %v461
      %v463 = vmul.f32 %v459, %v462
      %v464 = vsel %vm285, %v463, 0.0
      %465 = vadd.xlane.f32.xlu0 %v464
      %v466 = vpop.xlane.xlu0 %465
      %v467 = vsub.f32 %v462, %v466
      %v468 = vmul.f32 %v459, %v467
      %v469 = vadd.f32 %v466, 1.0
      %v470 = vmul.f32 %v469, 2.0
      %v471 = vrcp.pop %v470
      %v472 = vmul.f32 %v470, %v471
      %v473 = vsub.f32 1.0, %v472
      %v474 = vmul.f32 %v471, %v473
      %v475 = vadd.f32 %v471, %v474
      %vm476 = vweird.f32 %v470
      %vm477 = vweird.f32 %v471
      %vm478 = vmor %vm476, %vm477
      %v479 = vsel %vm478, %v471, %v475
      %v480 = vand.u32 2147483647, %v470
      %vm481 = vcmp.eq.f32.partialorder %v480, 8.507059e+37
      %v482 = vand.u32 %v470, 2147483648
      %v483 = vor.u32 1.1754944e-38, %v482
      %v484 = vsel %vm481, %v483, %v479
      %v485 = vmul.f32 %v468, %v484
      %v486 = vld [vmem:[#allocation4] sm:$0xff]
      %v488 = vsel %vm393, %v485, 0
      %490 = vmatpush.msra.mxu0 0.0
      %491 = vmatpush.msra.mxu0 0.0
      %492 = vmatpush.msra.mxu0 0.0
      %493 = vmatpush.msra.mxu0 0.0
      %494 = vmatpush.msra.mxu0 0.0
      %495 = vmatpush.msra.mxu0 0.0
      %496 = vmatpush.msra.mxu0 0.0
      %497 = vmatpush.msra.mxu0 0.0
      %498 = vmatpush.msra.mxu0 0.0
      %499 = vmatpush.msra.mxu0 0.0
      %500 = vmatpush.msra.mxu0 0.0
      %501 = vmatpush.msra.mxu0 0.0
      %502 = vmatpush.msra.mxu0 0.0
      %503 = vmatpush.msra.mxu0 0.0
      %504 = vmatpush.msra.mxu0 0.0
      %505 = vmatpush.msra.mxu0 %v486
      %506 = vmatmul.f32.gmra.mxu0 %v488
      %v507 = vpop.f32.mrf.mxu0
      %v508 = vadd.f32 0.0, %v507
      %509 = vdwg.mxu0
      %v510 = vmul.f32 %v508, %v485
      %v511 = vsel %vm285, %v510, 0.0
      %512 = vadd.xlane.f32.xlu0 %v511
      %v513 = vpop.xlane.xlu0 %512
      %v514 = vrsqrt.pop %v513
      %v515 = vmul.f32 %v514, %v513
      %v516 = vmul.f32 %v515, %v514
      %v517 = vmul.f32 0.5, %v516
      %v518 = vsub.f32 1.5, %v517
      %v519 = vmul.f32 %v514, %v518
      %v520 = vmul.f32 %v513, %v519
      %vm521 = vcmp.eq.f32.partialorder %v513, inf
      %v522 = vsel %vm521, %v513, %v520
      %vm523 = vcmp.eq.f32.partialorder %v513, 0.0
      %v524 = vand.u32 %v513, 2147483648
      %v525 = vsel %vm523, %v524, %v522
      %v526 = vmax.f32 %v525, 1e-12
      %v527 = vrcp.pop %v526
      %v528 = vmul.f32 %v526, %v527
      %v529 = vsub.f32 1.0, %v528
      %v530 = vmul.f32 %v527, %v529
      %v531 = vadd.f32 %v527, %v530
      %vm532 = vweird.f32 %v526
      %vm533 = vweird.f32 %v527
      %vm534 = vmor %vm532, %vm533
      %v535 = vsel %vm534, %v527, %v531
      %v536 = vand.u32 2147483647, %v526
      %vm537 = vcmp.eq.f32.partialorder %v536, 8.507059e+37
      %v538 = vand.u32 %v526, 2147483648
      %v539 = vor.u32 1.1754944e-38, %v538
      %v540 = vsel %vm537, %v539, %v535
      %v541 = vmul.f32 5.0, %v540
      %v542 = vmul.f32 %v541, %v508
      %v543 = vadd.f32 %v398, %v542
      %v544 = vlog2.pop %v444
      %v545 = vmul.f32 %v544, 0.6931472
      %v546 = vsub.f32 %v439, %v545
      %v547 = vsel %vm285, %v543, -inf
      %548 = vmax.xlane.f32.xlu0 %v547
      %v549 = vpop.xlane.xlu0 %548
      %v550 = vsub.f32 %v543, %v549
      %v551 = vmul.f32 %v550, 1.442695
      %v552 = vpow.pop %v551
      %v553 = vsel %vm285, %v552, 0.0
      %554 = vadd.xlane.f32.xlu0 %v553
      %v555 = vpop.xlane.xlu0 %554
      %v556 = vlog2.pop %v555
      %v557 = vmul.f32 %v556, 0.6931472
      %v558 = vsub.f32 %v550, %v557
      %v559 = vsub.f32 %v546, %v558
      %v560 = vmul.f32 %v459, %v559
      %v561 = vsel %vm285, %v560, 0.0
      %562 = vadd.xlane.f32.xlu0 %v561
      %v563 = vpop.xlane.xlu0 %562
      %564 = vst.msk [vmem:[%s4] sm:$0x3] %vm120, %v563
      %565 = vst.msk [vmem:[#allocation12] sm:$0x3] %vm285, %v543
      %v566 = vmul.f32 %v541, %v485
      %567 = vst.msk [vmem:[#allocation11] sm:$0x3] %vm285, %v566
    $region33: #{tpu_custom_call.1} parent=1 // pred_fallthru
      _
    // Predicated region
    $region34: #{tpu_custom_call.1} parent=1 // pred_check
      _
    $region35: #{tpu_custom_call.1} parent=1 // pred_check_branch
      %569 = sbr.rel (0) target = $region37
    $region36: #{tpu_custom_call.1} parent=1 // pred_region
      %571 = vsyncadd [#allocation7], 0
      %s573 = sshll.u32 [#allocation11], 4
      %s574 = int_to_ptr.vmem [resolvable:$true] %s573
      %s575 = sshll.u32 %s3, 4
      %s576 = int_to_ptr.hbm [resolvable:$true] %s575
      %578 = dma.vmem_to_hbm [thread:$0]  %s574, 32, %s576, [#allocation7]
    $region37: #{tpu_custom_call.1} parent=1 // pred_fallthru
      _
    // Predicated region
    $region38: #{tpu_custom_call.1} parent=1 // pred_check
      _
    $region39: #{tpu_custom_call.1} parent=1 // pred_check_branch
      %580 = sbr.rel (0) target = $region41
    $region40: #{tpu_custom_call.1} parent=1 // pred_region
      _
    $region41: #{tpu_custom_call.1} parent=1 // pred_fallthru
      _
    // Predicated region
    $region42: #{tpu_custom_call.1} parent=1 // pred_check
      _
    $region43: #{tpu_custom_call.1} parent=1 // pred_check_branch
      %582 = sbr.rel (0) target = $region45
    $region44: #{tpu_custom_call.1} parent=1 // pred_region
      %584 = vsyncadd [#allocation13], 0
      %s586 = sshll.u32 [#allocation12], 4
      %s587 = int_to_ptr.vmem [resolvable:$true] %s586
      %s588 = sshll.u32 %s5, 4
      %s589 = int_to_ptr.hbm [resolvable:$true] %s588
      %591 = dma.vmem_to_hbm [thread:$0]  %s587, 32, %s589, [#allocation13]
    $region45: #{tpu_custom_call.1} parent=1 // pred_fallthru
      _
    // Predicated region
    $region46: #{tpu_custom_call.1} parent=1 // pred_check
      _
    $region47: #{tpu_custom_call.1} parent=1 // pred_check_branch
      %593 = sbr.rel (0) target = $region49
    $region48: #{tpu_custom_call.1} parent=1 // pred_region
      %595 = dma.done [#allocation7], 32
    $region49: #{tpu_custom_call.1} parent=1 // pred_fallthru
      _
    // Predicated region
    $region50: #{tpu_custom_call.1} parent=1 // pred_check
      _
    $region51: #{tpu_custom_call.1} parent=1 // pred_check_branch
      %597 = sbr.rel (0) target = $region53
    $region52: #{tpu_custom_call.1} parent=1 // pred_region
      _
    $region53: #{tpu_custom_call.1} parent=1 // pred_fallthru
      _
    // Predicated region
    $region54: #{tpu_custom_call.1} parent=1 // pred_check
      _
    $region55: #{tpu_custom_call.1} parent=1 // pred_check_branch
      %599 = sbr.rel (0) target = $region57
    $region56: #{tpu_custom_call.1} parent=1 // pred_region
      %601 = dma.done [#allocation13], 32
    $region57: #{tpu_custom_call.1} parent=1 // pred_fallthru
      _
    %602 = vsyncpa [#allocation6], 1
    %603 = vsyncpa [#allocation9], 1
    %604 = vsyncpa [#allocation7], 1
    %605 = vsyncpa [#allocation13], 1

</llo_original>
